<compile_context>
chip_gen: v5e
topology: v5e:2x2
jax: 0.10.0
libtpu: 0.0.40
codegen_flags: <defaults>
</compile_context>

<pallas_src>
import functools

import jax
import jax.numpy as jnp
from jax.experimental import pallas as pl
from jax.experimental.pallas import tpu as pltpu


def _round_up(x: int, m: int) -> int:
    return (x + m - 1) // m * m


def _mlp_fused_kernel(*refs, num_layers: int, compute_dtype):
    """Runs the full MLP on one batch tile; activations stay in VMEM (bf16).

    refs = (x_ref, w0, b0, ..., w_{L-1}, b_{L-1}, o_ref, h_scratch)
      x_ref : (tm, in_p)    compute_dtype
      w_l   : (d_in, d_out) compute_dtype    b_l : (1, d_out) f32
      o_ref : (tm, out_p)   f32
      h_scratch : (tm, hid_p) compute_dtype VMEM
    """
    x_ref = refs[0]
    o_ref = refs[1 + 2 * num_layers]
    h_ref = refs[2 + 2 * num_layers]

    def wb(layer):
        return refs[1 + 2 * layer], refs[2 + 2 * layer]

    # Layer 0: bf16 matmul on MXU, f32 accumulate, bias + ReLU in f32,
    # activation stored as bf16 (same rounding point as feeding the next MXU).
    w0, b0 = wb(0)
    h = jnp.dot(x_ref[...], w0[...], preferred_element_type=jnp.float32)
    h_ref[...] = jnp.maximum(h + b0[...], 0.0).astype(compute_dtype)

    # Hidden layers (hid -> hid), ReLU.
    for layer in range(1, num_layers - 1):
        w, b = wb(layer)
        h = jnp.dot(h_ref[...], w[...], preferred_element_type=jnp.float32)
        h_ref[...] = jnp.maximum(h + b[...], 0.0).astype(compute_dtype)

    # Final layer: no activation; f32 epilogue and output.
    wl, bl = wb(num_layers - 1)
    y = jnp.dot(h_ref[...], wl[...], preferred_element_type=jnp.float32)
    o_ref[...] = (y + bl[...]).astype(o_ref.dtype)


def prepare_mlp_params(params, *, compute_dtype=jnp.bfloat16):
    """Pad + cast the parameters ONCE (hoisted out of the per-call path).

    params: list of (w, b) with w stored as (in, out), b as (out,).
    Returns a dict consumed by mlp_forward_pallas.
    """
    num_layers = len(params)
    assert num_layers >= 2, "module implies >= 2 Linear layers"
    in_dims = params[0][0].shape[0]
    hid_dims = params[0][0].shape[1]
    out_dims = params[-1][0].shape[1]
    # Uniform hidden width is assumed (matches the PyTorch module); guard loudly.
    for (w, _) in params[1:-1]:
        assert w.shape == (hid_dims, hid_dims), "non-uniform hidden widths unsupported"
    assert params[-1][0].shape[0] == hid_dims

    # Lane-dense padding: every feature dim -> multiple of 128 (exact zero pad).
    in_p = _round_up(in_dims, 128)
    hid_p = _round_up(hid_dims, 128)
    out_p = _round_up(out_dims, 128)

    d_ins = [in_p] + [hid_p] * (num_layers - 1)
    d_outs = [hid_p] * (num_layers - 1) + [out_p]

    flat_wb = []
    for (w, b), dip, dop in zip(params, d_ins, d_outs):
        ki, ko = w.shape
        w_p = jnp.zeros((dip, dop), compute_dtype).at[:ki, :ko].set(
            w.astype(compute_dtype))
        b_p = jnp.zeros((1, dop), jnp.float32).at[0, :ko].set(
            b.astype(jnp.float32))
        flat_wb += [w_p, b_p]

    return dict(
        flat_wb=tuple(flat_wb), num_layers=num_layers,
        in_dims=in_dims, out_dims=out_dims,
        in_p=in_p, hid_p=hid_p, out_p=out_p,
        d_ins=tuple(d_ins), d_outs=tuple(d_outs),
        compute_dtype=compute_dtype,
    )


# Per-tile-scaling VMEM budget: conservative so the single-buffered weights +
# tiles + scratch fit v7x's 64 MiB per-TC VMEM with headroom.
_VMEM_SOFT_BUDGET = 48 * 1024 * 1024


def _choose_tm(batch, in_p, hid_p, out_p, weight_bytes, itemsize):
    # Start from a cap that amortizes per-grid-step overhead (~0.35 us/step),
    # pick the tile so the last tile isn't mostly padding, then shrink if the
    # resident footprint would blow the VMEM budget.
    tm_cap = 512
    n_tiles = -(-batch // tm_cap)
    tm = max(16, _round_up(-(-batch // n_tiles), 16))

    def vmem_est(tm_):
        x_tile = 2 * tm_ * in_p * itemsize        # double-buffered input tile
        o_tile = 2 * tm_ * out_p * 4              # double-buffered f32 output tile
        scratch = tm_ * hid_p * itemsize          # bf16 activation scratch
        return weight_bytes + x_tile + o_tile + scratch

    while vmem_est(tm) > _VMEM_SOFT_BUDGET and tm > 16:
        tm = max(16, _round_up(tm // 2, 16))
    return tm, vmem_est(tm)


def mlp_forward_pallas(prepared, x):
    """x: (batch, in_dims). Returns (batch, out_dims) f32."""
    p = prepared
    compute_dtype = p["compute_dtype"]
    num_layers = p["num_layers"]
    in_dims, out_dims = p["in_dims"], p["out_dims"]
    in_p, hid_p, out_p = p["in_p"], p["hid_p"], p["out_p"]
    d_ins, d_outs = p["d_ins"], p["d_outs"]
    flat_wb = p["flat_wb"]

    batch = x.shape[0]
    assert x.shape[1] == in_dims

    itemsize = jnp.dtype(compute_dtype).itemsize
    weight_bytes = sum(int(a.nbytes) for a in flat_wb)   # single-buffered
    tm, vmem_est = _choose_tm(batch, in_p, hid_p, out_p, weight_bytes, itemsize)
    m_p = _round_up(batch, tm)

    # Skip the padding pass entirely when x is already row/lane aligned.
    if (m_p, in_p) == (batch, in_dims) and x.dtype == compute_dtype:
        x_p = x
    else:
        x_p = jnp.zeros((m_p, in_p), compute_dtype).at[:batch, :in_dims].set(
            x.astype(compute_dtype))

    in_specs = [pl.BlockSpec((tm, in_p), lambda i: (i, 0))]
    for dip, dop in zip(d_ins, d_outs):
        # Constant index_maps -> single-buffer the resident weights/biases.
        in_specs.append(pl.BlockSpec((dip, dop), lambda i: (0, 0),
                                     pipeline_mode=pl.Buffered(1)))
        in_specs.append(pl.BlockSpec((1, dop), lambda i: (0, 0),
                                     pipeline_mode=pl.Buffered(1)))

    flops = sum(2 * m_p * dip * dop for dip, dop in zip(d_ins, d_outs))
    bytes_accessed = int(x_p.nbytes + weight_bytes + m_p * out_p * 4)

    vmem_limit = min(128 * 1024 * 1024,
                     max(32 * 1024 * 1024, int(vmem_est * 1.2)))

    kernel = functools.partial(_mlp_fused_kernel, num_layers=num_layers,
                               compute_dtype=compute_dtype)

    out_padded = pl.pallas_call(
        kernel,
        out_shape=jax.ShapeDtypeStruct((m_p, out_p), jnp.float32),
        grid=(m_p // tm,),
        in_specs=in_specs,
        out_specs=pl.BlockSpec((tm, out_p), lambda i: (i, 0)),
        scratch_shapes=[pltpu.VMEM((tm, hid_p), compute_dtype)],
        compiler_params=pltpu.CompilerParams(
            dimension_semantics=("parallel",),
            vmem_limit_bytes=vmem_limit),
        cost_estimate=pl.CostEstimate(
            flops=flops, transcendentals=0, bytes_accessed=bytes_accessed),
    )(x_p, *flat_wb)

    if (m_p, out_p) == (batch, out_dims):
        return out_padded
    return out_padded[:batch, :out_dims]


def init_mlp_params(key, in_dims, hidden_dims, out_dims, hidden_layers):
    """kaiming_normal_ (fan_in, gain=sqrt(2)) weights, zero biases. W as (in,out)."""
    dims = [in_dims] + [hidden_dims] * (hidden_layers + 1) + [out_dims]
    params = []
    for i in range(len(dims) - 1):
        fan_in, fan_out = dims[i], dims[i + 1]
        key, sub = jax.random.split(key)
        std = jnp.sqrt(2.0 / fan_in)
        w = jax.random.normal(sub, (fan_in, fan_out), dtype=jnp.float32) * std
        b = jnp.zeros((fan_out,), dtype=jnp.float32)
        params.append((w, b))
    return params


def mlp_reference(params, x, compute_dtype=jnp.bfloat16):
    """Pure-JAX reference mirroring the kernel's bf16-in / f32-accumulate math."""
    h = x
    n = len(params)
    for i, (w, b) in enumerate(params):
        h = jnp.dot(h.astype(compute_dtype), w.astype(compute_dtype),
                    preferred_element_type=jnp.float32) + b
        if i != n - 1:
            h = jnp.maximum(h, 0.0)
    return h


if __name__ == "__main__":
    # Small shapes consistent with the module: batch=8, in=16, hidden=32,
    # out=8, hidden_layers=2 (=> 4 Linear layers total).
    in_dims, hidden_dims, out_dims, hidden_layers = 16, 32, 8, 2
    batch = 8

    key = jax.random.PRNGKey(0)
    key_x, key_p = jax.random.split(key)
    x = jax.random.normal(key_x, (batch, in_dims), dtype=jnp.float32)
    params = init_mlp_params(key_p, in_dims, hidden_dims, out_dims, hidden_layers)

    prepared = prepare_mlp_params(params)          # one-time pad + cast
    out = mlp_forward_pallas(prepared, x)
    out = jax.block_until_ready(out)

    ref = mlp_reference(params, x)
    assert out.shape == (batch, out_dims)
    assert jnp.allclose(out, ref, atol=1e-2, rtol=1e-2), (
        f"max abs err {jnp.max(jnp.abs(out - ref))}")

    print("KERNEL_OK")
</pallas_src>

<mosaic_0001>
module attributes {stable_mosaic.version = 11 : i64} {
  func.func @_mlp_fused_kernel(%arg0: i32, %arg1: memref<16x128xbf16, #tpu.memory_space<vmem>>, %arg2: memref<128x128xbf16, #tpu.memory_space<vmem>>, %arg3: memref<1x128xf32, #tpu.memory_space<vmem>>, %arg4: memref<128x128xbf16, #tpu.memory_space<vmem>>, %arg5: memref<1x128xf32, #tpu.memory_space<vmem>>, %arg6: memref<128x128xbf16, #tpu.memory_space<vmem>>, %arg7: memref<1x128xf32, #tpu.memory_space<vmem>>, %arg8: memref<128x128xbf16, #tpu.memory_space<vmem>>, %arg9: memref<1x128xf32, #tpu.memory_space<vmem>>, %arg10: memref<16x128xf32, #tpu.memory_space<vmem>>, %arg11: memref<16x128xbf16, #tpu.memory_space<vmem>>) attributes {dimension_semantics = [#tpu.dimension_semantics<parallel>], iteration_bounds = array<i64: 1>, scalar_prefetch = 0 : i64, scratch_operands = 1 : i64, tpu.core_type = #tpu.core_type<tc>, window_params = [{transform_indices = @transform_0, window_bounds = array<i64: 16, 128>}, {pipeline_mode = #tpu.pipeline_mode<synchronous>, transform_indices = @transform_1, window_bounds = array<i64: 128, 128>}, {pipeline_mode = #tpu.pipeline_mode<synchronous>, transform_indices = @transform_2, window_bounds = array<i64: 1, 128>}, {pipeline_mode = #tpu.pipeline_mode<synchronous>, transform_indices = @transform_3, window_bounds = array<i64: 128, 128>}, {pipeline_mode = #tpu.pipeline_mode<synchronous>, transform_indices = @transform_4, window_bounds = array<i64: 1, 128>}, {pipeline_mode = #tpu.pipeline_mode<synchronous>, transform_indices = @transform_5, window_bounds = array<i64: 128, 128>}, {pipeline_mode = #tpu.pipeline_mode<synchronous>, transform_indices = @transform_6, window_bounds = array<i64: 1, 128>}, {pipeline_mode = #tpu.pipeline_mode<synchronous>, transform_indices = @transform_7, window_bounds = array<i64: 128, 128>}, {pipeline_mode = #tpu.pipeline_mode<synchronous>, transform_indices = @transform_8, window_bounds = array<i64: 1, 128>}, {transform_indices = @transform_9, window_bounds = array<i64: 16, 128>}]} {
    %c0 = arith.constant 0 : index
    %c0_0 = arith.constant 0 : index
    %0 = vector.load %arg1[%c0, %c0_0] : memref<16x128xbf16, #tpu.memory_space<vmem>>, vector<16x128xbf16>
    %c0_1 = arith.constant 0 : index
    %c0_2 = arith.constant 0 : index
    %1 = vector.load %arg2[%c0_1, %c0_2] : memref<128x128xbf16, #tpu.memory_space<vmem>>, vector<128x128xbf16>
    %cst = arith.constant dense<0.000000e+00> : vector<16x128xf32>
    %2 = tpu.matmul %0, %1, %cst {dimension_numbers = #tpu.dot_dimension_numbers<[1], [0], [0], [1], [0, 0, 1, 1], [], []>} : vector<16x128xbf16>, vector<128x128xbf16>, vector<16x128xf32> -> vector<16x128xf32>
    %c0_3 = arith.constant 0 : index
    %c0_4 = arith.constant 0 : index
    %3 = vector.load %arg3[%c0_3, %c0_4] : memref<1x128xf32, #tpu.memory_space<vmem>>, vector<1x128xf32>
    %4 = vector.broadcast %3 : vector<1x128xf32> to vector<16x128xf32>
    %5 = arith.addf %2, %4 : vector<16x128xf32>
    %cst_5 = arith.constant 0.000000e+00 : f32
    %6 = vector.broadcast %cst_5 : f32 to vector<16x128xf32>
    %7 = arith.maximumf %5, %6 : vector<16x128xf32>
    %8 = arith.truncf %7 : vector<16x128xf32> to vector<16x128xbf16>
    %c0_6 = arith.constant 0 : index
    %c0_7 = arith.constant 0 : index
    %9 = vector.load %arg11[%c0_6, %c0_7] : memref<16x128xbf16, #tpu.memory_space<vmem>>, vector<16x128xbf16>
    tpu.vector_store %arg11[%c0_6, %c0_7], %8 {strides = array<i32>} : memref<16x128xbf16, #tpu.memory_space<vmem>>, vector<16x128xbf16>,
    %c0_8 = arith.constant 0 : index
    %c0_9 = arith.constant 0 : index
    %10 = vector.load %arg11[%c0_8, %c0_9] : memref<16x128xbf16, #tpu.memory_space<vmem>>, vector<16x128xbf16>
    %c0_10 = arith.constant 0 : index
    %c0_11 = arith.constant 0 : index
    %11 = vector.load %arg4[%c0_10, %c0_11] : memref<128x128xbf16, #tpu.memory_space<vmem>>, vector<128x128xbf16>
    %cst_12 = arith.constant dense<0.000000e+00> : vector<16x128xf32>
    %12 = tpu.matmul %10, %11, %cst_12 {dimension_numbers = #tpu.dot_dimension_numbers<[1], [0], [0], [1], [0, 0, 1, 1], [], []>} : vector<16x128xbf16>, vector<128x128xbf16>, vector<16x128xf32> -> vector<16x128xf32>
    %c0_13 = arith.constant 0 : index
    %c0_14 = arith.constant 0 : index
    %13 = vector.load %arg5[%c0_13, %c0_14] : memref<1x128xf32, #tpu.memory_space<vmem>>, vector<1x128xf32>
    %14 = vector.broadcast %13 : vector<1x128xf32> to vector<16x128xf32>
    %15 = arith.addf %12, %14 : vector<16x128xf32>
    %cst_15 = arith.constant 0.000000e+00 : f32
    %16 = vector.broadcast %cst_15 : f32 to vector<16x128xf32>
    %17 = arith.maximumf %15, %16 : vector<16x128xf32>
    %18 = arith.truncf %17 : vector<16x128xf32> to vector<16x128xbf16>
    %c0_16 = arith.constant 0 : index
    %c0_17 = arith.constant 0 : index
    %19 = vector.load %arg11[%c0_16, %c0_17] : memref<16x128xbf16, #tpu.memory_space<vmem>>, vector<16x128xbf16>
    tpu.vector_store %arg11[%c0_16, %c0_17], %18 {strides = array<i32>} : memref<16x128xbf16, #tpu.memory_space<vmem>>, vector<16x128xbf16>,
    %c0_18 = arith.constant 0 : index
    %c0_19 = arith.constant 0 : index
    %20 = vector.load %arg11[%c0_18, %c0_19] : memref<16x128xbf16, #tpu.memory_space<vmem>>, vector<16x128xbf16>
    %c0_20 = arith.constant 0 : index
    %c0_21 = arith.constant 0 : index
    %21 = vector.load %arg6[%c0_20, %c0_21] : memref<128x128xbf16, #tpu.memory_space<vmem>>, vector<128x128xbf16>
    %cst_22 = arith.constant dense<0.000000e+00> : vector<16x128xf32>
    %22 = tpu.matmul %20, %21, %cst_22 {dimension_numbers = #tpu.dot_dimension_numbers<[1], [0], [0], [1], [0, 0, 1, 1], [], []>} : vector<16x128xbf16>, vector<128x128xbf16>, vector<16x128xf32> -> vector<16x128xf32>
    %c0_23 = arith.constant 0 : index
    %c0_24 = arith.constant 0 : index
    %23 = vector.load %arg7[%c0_23, %c0_24] : memref<1x128xf32, #tpu.memory_space<vmem>>, vector<1x128xf32>
    %24 = vector.broadcast %23 : vector<1x128xf32> to vector<16x128xf32>
    %25 = arith.addf %22, %24 : vector<16x128xf32>
    %cst_25 = arith.constant 0.000000e+00 : f32
    %26 = vector.broadcast %cst_25 : f32 to vector<16x128xf32>
    %27 = arith.maximumf %25, %26 : vector<16x128xf32>
    %28 = arith.truncf %27 : vector<16x128xf32> to vector<16x128xbf16>
    %c0_26 = arith.constant 0 : index
    %c0_27 = arith.constant 0 : index
    %29 = vector.load %arg11[%c0_26, %c0_27] : memref<16x128xbf16, #tpu.memory_space<vmem>>, vector<16x128xbf16>
    tpu.vector_store %arg11[%c0_26, %c0_27], %28 {strides = array<i32>} : memref<16x128xbf16, #tpu.memory_space<vmem>>, vector<16x128xbf16>,
    %c0_28 = arith.constant 0 : index
    %c0_29 = arith.constant 0 : index
    %30 = vector.load %arg11[%c0_28, %c0_29] : memref<16x128xbf16, #tpu.memory_space<vmem>>, vector<16x128xbf16>
    %c0_30 = arith.constant 0 : index
    %c0_31 = arith.constant 0 : index
    %31 = vector.load %arg8[%c0_30, %c0_31] : memref<128x128xbf16, #tpu.memory_space<vmem>>, vector<128x128xbf16>
    %cst_32 = arith.constant dense<0.000000e+00> : vector<16x128xf32>
    %32 = tpu.matmul %30, %31, %cst_32 {dimension_numbers = #tpu.dot_dimension_numbers<[1], [0], [0], [1], [0, 0, 1, 1], [], []>} : vector<16x128xbf16>, vector<128x128xbf16>, vector<16x128xf32> -> vector<16x128xf32>
    %c0_33 = arith.constant 0 : index
    %c0_34 = arith.constant 0 : index
    %33 = vector.load %arg9[%c0_33, %c0_34] : memref<1x128xf32, #tpu.memory_space<vmem>>, vector<1x128xf32>
    %34 = vector.broadcast %33 : vector<1x128xf32> to vector<16x128xf32>
    %35 = arith.addf %32, %34 : vector<16x128xf32>
    %c0_35 = arith.constant 0 : index
    %c0_36 = arith.constant 0 : index
    %36 = vector.load %arg10[%c0_35, %c0_36] : memref<16x128xf32, #tpu.memory_space<vmem>>, vector<16x128xf32>
    tpu.vector_store %arg10[%c0_35, %c0_36], %35 {strides = array<i32>} : memref<16x128xf32, #tpu.memory_space<vmem>>, vector<16x128xf32>,
    return
  }
  func.func @transform_0(%arg0: i32) -> (i32, i32) {
    %c0_i32 = arith.constant 0 : i32
    %c0_i32_0 = arith.constant 0 : i32
    return %arg0, %c0_i32 : i32, i32
  }
  func.func @transform_1(%arg0: i32) -> (i32, i32) {
    %c0_i32 = arith.constant 0 : i32
    %c0_i32_0 = arith.constant 0 : i32
    %c0_i32_1 = arith.constant 0 : i32
    return %c0_i32, %c0_i32_0 : i32, i32
  }
  func.func @transform_2(%arg0: i32) -> (i32, i32) {
    %c0_i32 = arith.constant 0 : i32
    %c0_i32_0 = arith.constant 0 : i32
    %c0_i32_1 = arith.constant 0 : i32
    return %c0_i32, %c0_i32_0 : i32, i32
  }
  func.func @transform_3(%arg0: i32) -> (i32, i32) {
    %c0_i32 = arith.constant 0 : i32
    %c0_i32_0 = arith.constant 0 : i32
    %c0_i32_1 = arith.constant 0 : i32
    return %c0_i32, %c0_i32_0 : i32, i32
  }
  func.func @transform_4(%arg0: i32) -> (i32, i32) {
    %c0_i32 = arith.constant 0 : i32
    %c0_i32_0 = arith.constant 0 : i32
    %c0_i32_1 = arith.constant 0 : i32
    return %c0_i32, %c0_i32_0 : i32, i32
  }
  func.func @transform_5(%arg0: i32) -> (i32, i32) {
    %c0_i32 = arith.constant 0 : i32
    %c0_i32_0 = arith.constant 0 : i32
    %c0_i32_1 = arith.constant 0 : i32
    return %c0_i32, %c0_i32_0 : i32, i32
  }
  func.func @transform_6(%arg0: i32) -> (i32, i32) {
    %c0_i32 = arith.constant 0 : i32
    %c0_i32_0 = arith.constant 0 : i32
    %c0_i32_1 = arith.constant 0 : i32
    return %c0_i32, %c0_i32_0 : i32, i32
  }
  func.func @transform_7(%arg0: i32) -> (i32, i32) {
    %c0_i32 = arith.constant 0 : i32
    %c0_i32_0 = arith.constant 0 : i32
    %c0_i32_1 = arith.constant 0 : i32
    return %c0_i32, %c0_i32_0 : i32, i32
  }
  func.func @transform_8(%arg0: i32) -> (i32, i32) {
    %c0_i32 = arith.constant 0 : i32
    %c0_i32_0 = arith.constant 0 : i32
    %c0_i32_1 = arith.constant 0 : i32
    return %c0_i32, %c0_i32_0 : i32, i32
  }
  func.func @transform_9(%arg0: i32) -> (i32, i32) {
    %c0_i32 = arith.constant 0 : i32
    %c0_i32_0 = arith.constant 0 : i32
    return %arg0, %c0_i32 : i32, i32
  }
}

</mosaic_0001>

<llo_original>
// kernel: tpu_custom_call.1
$region0: #{tpu_custom_call.1}
  #allocation0 [shape = 'u32[]', space=smem, size = 0x4, offset = 0x4, fixed_abs, tag = 'smem constant byte address 0x4 - core index']
  #allocation1 [shape = 'u32[72,128]{1,0:T(1,128)}', space=vmem, size = 0x9000, scoped, tag = 'internal scratch']
  #allocation2 [shape = 'bf16[16,128]{1,0:T(8,128)(2,1)}', space=vmem, size = 0x1000, scoped, tag = 'scratch operand']
  %s0 = inlined_call_operand.hbm [shape: bf16[16,128], index: 0, kind: input, shape index: {}]
  %s1 = inlined_call_operand.hbm [shape: bf16[128,128], index: 1, kind: input, shape index: {}]
  %s2 = inlined_call_operand.vmem [shape: f32[1,128], index: 2, kind: input, shape index: {}]
  %s3 = inlined_call_operand.hbm [shape: bf16[128,128], index: 3, kind: input, shape index: {}]
  %s4 = inlined_call_operand.vmem [shape: f32[1,128], index: 4, kind: input, shape index: {}]
  %s5 = inlined_call_operand.hbm [shape: bf16[128,128], index: 5, kind: input, shape index: {}]
  %s6 = inlined_call_operand.vmem [shape: f32[1,128], index: 6, kind: input, shape index: {}]
  %s7 = inlined_call_operand.hbm [shape: bf16[128,128], index: 7, kind: input, shape index: {}]
  %s8 = inlined_call_operand.vmem [shape: f32[1,128], index: 8, kind: input, shape index: {}]
  %s9 = inlined_call_operand.hbm [shape: f32[16,128], index: 9, kind: output, shape index: {}]
  %s10 = sld [smem:[#allocation0]]
  $region66: #{tpu_custom_call.1} parent=0
    _
  %s12 = ssub.s32 1, %s10
  %s13 = scalar_select 0, %s12, %s10
  $region1: #{tpu_custom_call.1} parent=0
    #allocation3 [shape = 'u8[4096]{0}', space=vmem, size = 0x1000, scoped, tag = 'input window, operand 0, single buffered']
    #allocation4 [shape = 's32[1]{0}', space=sflag, size = 0x4, scoped, tag = 'scoped memory for tpu_custom_call.1']
    #allocation5 [shape = 's32[1]{0}', space=sflag, size = 0x4, scoped, tag = 'scoped memory for tpu_custom_call.1']
    #allocation6 [shape = 'u8[32768]{0}', space=vmem, size = 0x8000, scoped, tag = 'input window, operand 1, single buffered']
    #allocation7 [shape = 's32[1]{0}', space=sflag, size = 0x4, scoped, tag = 'scoped memory for tpu_custom_call.1']
    #allocation8 [shape = 'u8[32768]{0}', space=vmem, size = 0x8000, scoped, tag = 'input window, operand 3, single buffered']
    #allocation9 [shape = 'u8[32768]{0}', space=vmem, size = 0x8000, scoped, tag = 'input window, operand 5, single buffered']
    #allocation10 [shape = 's32[1]{0}', space=sflag, size = 0x4, scoped, tag = 'scoped memory for tpu_custom_call.1']
    #allocation11 [shape = 'u8[32768]{0}', space=vmem, size = 0x8000, scoped, tag = 'input window, operand 7, single buffered']
    #allocation12 [shape = 'u8[8192]{0}', space=vmem, size = 0x2000, scoped, tag = 'output window, operand 0, single buffered']
    %14 = vsyncpa [#allocation4], 0
    %15 = vsyncpa [#allocation7], 0
    %16 = vsyncpa [#allocation10], 0
    %17 = vsyncpa [#allocation5], 0
    // Predicated region
    $region2: #{tpu_custom_call.1} parent=1 // pred_check
      _
    $region3: #{tpu_custom_call.1} parent=1 // pred_check_branch
      %19 = sbr.rel (0) target = $region5
    $region4: #{tpu_custom_call.1} parent=1 // pred_region
      %21 = vsyncadd [#allocation4], 0
      %s22 = sshll.u32 %s0, 4
      %s23 = int_to_ptr.hbm [resolvable:$true] %s22
      %s24 = sshll.u32 [#allocation3], 4
      %s25 = int_to_ptr.vmem [resolvable:$true] %s24
      %30 = dma.hbm_to_vmem [thread:$0]  %s23, 128, %s25, [#allocation4], 64, 64, 4
    $region5: #{tpu_custom_call.1} parent=1 // pred_fallthru
      _
    // Predicated region
    $region6: #{tpu_custom_call.1} parent=1 // pred_check
      _
    $region7: #{tpu_custom_call.1} parent=1 // pred_check_branch
      %32 = sbr.rel (0) target = $region9
    $region8: #{tpu_custom_call.1} parent=1 // pred_region
      %34 = vsyncadd [#allocation7], 0
      %s35 = sshll.u32 %s1, 4
      %s36 = int_to_ptr.hbm [resolvable:$true] %s35
      %s37 = sshll.u32 [#allocation6], 4
      %s38 = int_to_ptr.vmem [resolvable:$true] %s37
      %43 = dma.hbm_to_vmem [thread:$0]  %s36, 1024, %s38, [#allocation7], 64, 64, 4
    $region9: #{tpu_custom_call.1} parent=1 // pred_fallthru
      _
    // Predicated region
    $region10: #{tpu_custom_call.1} parent=1 // pred_check
      _
    $region11: #{tpu_custom_call.1} parent=1 // pred_check_branch
      %45 = sbr.rel (0) target = $region13
    $region12: #{tpu_custom_call.1} parent=1 // pred_region
      _
    $region13: #{tpu_custom_call.1} parent=1 // pred_fallthru
      _
    // Predicated region
    $region14: #{tpu_custom_call.1} parent=1 // pred_check
      _
    $region15: #{tpu_custom_call.1} parent=1 // pred_check_branch
      %47 = sbr.rel (0) target = $region17
    $region16: #{tpu_custom_call.1} parent=1 // pred_region
      %49 = vsyncadd [#allocation7], 0
      %s50 = sshll.u32 %s3, 4
      %s51 = int_to_ptr.hbm [resolvable:$true] %s50
      %s52 = sshll.u32 [#allocation8], 4
      %s53 = int_to_ptr.vmem [resolvable:$true] %s52
      %58 = dma.hbm_to_vmem [thread:$0]  %s51, 1024, %s53, [#allocation7], 64, 64, 4
    $region17: #{tpu_custom_call.1} parent=1 // pred_fallthru
      _
    // Predicated region
    $region18: #{tpu_custom_call.1} parent=1 // pred_check
      _
    $region19: #{tpu_custom_call.1} parent=1 // pred_check_branch
      %60 = sbr.rel (0) target = $region21
    $region20: #{tpu_custom_call.1} parent=1 // pred_region
      _
    $region21: #{tpu_custom_call.1} parent=1 // pred_fallthru
      _
    // Predicated region
    $region22: #{tpu_custom_call.1} parent=1 // pred_check
      _
    $region23: #{tpu_custom_call.1} parent=1 // pred_check_branch
      %62 = sbr.rel (0) target = $region25
    $region24: #{tpu_custom_call.1} parent=1 // pred_region
      %64 = vsyncadd [#allocation10], 0
      %s65 = sshll.u32 %s5, 4
      %s66 = int_to_ptr.hbm [resolvable:$true] %s65
      %s67 = sshll.u32 [#allocation9], 4
      %s68 = int_to_ptr.vmem [resolvable:$true] %s67
      %73 = dma.hbm_to_vmem [thread:$0]  %s66, 1024, %s68, [#allocation10], 64, 64, 4
    $region25: #{tpu_custom_call.1} parent=1 // pred_fallthru
      _
    // Predicated region
    $region26: #{tpu_custom_call.1} parent=1 // pred_check
      _
    $region27: #{tpu_custom_call.1} parent=1 // pred_check_branch
      %75 = sbr.rel (0) target = $region29
    $region28: #{tpu_custom_call.1} parent=1 // pred_region
      _
    $region29: #{tpu_custom_call.1} parent=1 // pred_fallthru
      _
    // Predicated region
    $region30: #{tpu_custom_call.1} parent=1 // pred_check
      _
    $region31: #{tpu_custom_call.1} parent=1 // pred_check_branch
      %77 = sbr.rel (0) target = $region33
    $region32: #{tpu_custom_call.1} parent=1 // pred_region
      %79 = vsyncadd [#allocation10], 0
      %s80 = sshll.u32 %s7, 4
      %s81 = int_to_ptr.hbm [resolvable:$true] %s80
      %s82 = sshll.u32 [#allocation11], 4
      %s83 = int_to_ptr.vmem [resolvable:$true] %s82
      %88 = dma.hbm_to_vmem [thread:$0]  %s81, 1024, %s83, [#allocation10], 64, 64, 4
    $region33: #{tpu_custom_call.1} parent=1 // pred_fallthru
      _
    // Predicated region
    $region34: #{tpu_custom_call.1} parent=1 // pred_check
      _
    $region35: #{tpu_custom_call.1} parent=1 // pred_check_branch
      %90 = sbr.rel (0) target = $region37
    $region36: #{tpu_custom_call.1} parent=1 // pred_region
      _
    $region37: #{tpu_custom_call.1} parent=1 // pred_fallthru
      _
    // Predicated region
    $region38: #{tpu_custom_call.1} parent=1 // pred_check
      _
    $region39: #{tpu_custom_call.1} parent=1 // pred_check_branch
      %92 = sbr.rel (0) target = $region41
    $region40: #{tpu_custom_call.1} parent=1 // pred_region
      %94 = dma.done [#allocation4], 128
    $region41: #{tpu_custom_call.1} parent=1 // pred_fallthru
      _
    // Predicated region
    $region42: #{tpu_custom_call.1} parent=1 // pred_check
      _
    $region43: #{tpu_custom_call.1} parent=1 // pred_check_branch
      %96 = sbr.rel (0) target = $region45
    $region44: #{tpu_custom_call.1} parent=1 // pred_region
      %98 = dma.done [#allocation7], 1024
    $region45: #{tpu_custom_call.1} parent=1 // pred_fallthru
      _
    // Predicated region
    $region46: #{tpu_custom_call.1} parent=1 // pred_check
      _
    $region47: #{tpu_custom_call.1} parent=1 // pred_check_branch
      %100 = sbr.rel (0) target = $region49
    $region48: #{tpu_custom_call.1} parent=1 // pred_region
      %102 = dma.done [#allocation7], 1024
    $region49: #{tpu_custom_call.1} parent=1 // pred_fallthru
      _
    // Predicated region
    $region50: #{tpu_custom_call.1} parent=1 // pred_check
      _
    $region51: #{tpu_custom_call.1} parent=1 // pred_check_branch
      %104 = sbr.rel (0) target = $region53
    $region52: #{tpu_custom_call.1} parent=1 // pred_region
      %106 = dma.done [#allocation10], 1024
    $region53: #{tpu_custom_call.1} parent=1 // pred_fallthru
      _
    // Predicated region
    $region54: #{tpu_custom_call.1} parent=1 // pred_check
      _
    $region55: #{tpu_custom_call.1} parent=1 // pred_check_branch
      %108 = sbr.rel (0) target = $region57
    $region56: #{tpu_custom_call.1} parent=1 // pred_region
      %110 = dma.done [#allocation10], 1024
    $region57: #{tpu_custom_call.1} parent=1 // pred_fallthru
      _
    %v111 = vld [vmem:[#allocation3] sm:$0xf]
    %v112 = vld [vmem:[#allocation3 + $0x4] sm:$0xf]
    %v113 = vld [vmem:[#allocation6] sm:$0xf]
    %v114 = vld [vmem:[#allocation6 + $0x4] sm:$0xf]
    %v115 = vld [vmem:[#allocation6 + $0x8] sm:$0xf]
    %v116 = vld [vmem:[#allocation6 + $0xc] sm:$0xf]
    %v117 = vld [vmem:[#allocation6 + $0x10] sm:$0xf]
    %v118 = vld [vmem:[#allocation6 + $0x14] sm:$0xf]
    %v119 = vld [vmem:[#allocation6 + $0x18] sm:$0xf]
    %v120 = vld [vmem:[#allocation6 + $0x1c] sm:$0xf]
    %v121 = vld [vmem:[#allocation6 + $0x20] sm:$0xf]
    %v122 = vld [vmem:[#allocation6 + $0x24] sm:$0xf]
    %v123 = vld [vmem:[#allocation6 + $0x28] sm:$0xf]
    %v124 = vld [vmem:[#allocation6 + $0x2c] sm:$0xf]
    %v125 = vld [vmem:[#allocation6 + $0x30] sm:$0xf]
    %v126 = vld [vmem:[#allocation6 + $0x34] sm:$0xf]
    %v127 = vld [vmem:[#allocation6 + $0x38] sm:$0xf]
    %v128 = vld [vmem:[#allocation6 + $0x3c] sm:$0xf]
    %v129 = vld [vmem:[%s2] sm:$0x1]
    %v131 = vperm.slane %v129, 0
    %v135 = vunpack.c.l.b16 %v111
    %v136 = vunpack.c.l.b16 %v112
    %v137 = vpack.c.b16 %v136, %v135
    %v155 = vunpack.c.l.b16 %v113
    %v156 = vunpack.c.l.b16 %v114
    %v157 = vunpack.c.l.b16 %v115
    %v158 = vunpack.c.l.b16 %v116
    %v159 = vunpack.c.l.b16 %v117
    %v160 = vunpack.c.l.b16 %v118
    %v161 = vunpack.c.l.b16 %v119
    %v162 = vunpack.c.l.b16 %v120
    %v163 = vunpack.c.l.b16 %v121
    %v164 = vunpack.c.l.b16 %v122
    %v165 = vunpack.c.l.b16 %v123
    %v166 = vunpack.c.l.b16 %v124
    %v167 = vunpack.c.l.b16 %v125
    %v168 = vunpack.c.l.b16 %v126
    %v169 = vunpack.c.l.b16 %v127
    %v170 = vunpack.c.l.b16 %v128
    %v171 = vpack.c.b16 %v156, %v155
    %v172 = vpack.c.b16 %v158, %v157
    %v173 = vpack.c.b16 %v160, %v159
    %v174 = vpack.c.b16 %v162, %v161
    %v175 = vpack.c.b16 %v164, %v163
    %v176 = vpack.c.b16 %v166, %v165
    %v177 = vpack.c.b16 %v168, %v167
    %v178 = vpack.c.b16 %v170, %v169
    %187 = vmatpush.bf16.msra.mxu0 %v178
    %188 = vmatpush.bf16.msra.mxu0 %v177
    %189 = vmatpush.bf16.msra.mxu0 %v176
    %190 = vmatpush.bf16.msra.mxu0 %v175
    %191 = vmatpush.bf16.msra.mxu0 %v174
    %192 = vmatpush.bf16.msra.mxu0 %v173
    %193 = vmatpush.bf16.msra.mxu0 %v172
    %194 = vmatpush.bf16.msra.mxu0 %v171
    %195 = vmatmul.bf16.gmra.mxu0 %v137
    %v196 = vpop.f32.mrf.mxu0
    %v197 = vadd.f32 %v131, %v196
    %v198 = vpop.f32.mrf.mxu0
    %v199 = vadd.f32 %v131, %v198
    %200 = vdwg.mxu0
    %v201 = vmax.f32 %v197, 0.0
    %v202 = vmax.f32 %v199, 0.0
    %v203 = vpack.c.bf16 %v201, %v201
    %v204 = vpack.c.bf16 %v202, %v202
    %205 = vst [vmem:[#allocation2] sm:$0xf] %v203
    %206 = vst [vmem:[#allocation2 + $0x4] sm:$0xf] %v204
    %v207 = vld [vmem:[#allocation2] sm:$0xf]
    %v208 = vld [vmem:[#allocation2 + $0x4] sm:$0xf]
    %v209 = vld [vmem:[#allocation8] sm:$0xf]
    %v210 = vld [vmem:[#allocation8 + $0x4] sm:$0xf]
    %v211 = vld [vmem:[#allocation8 + $0x8] sm:$0xf]
    %v212 = vld [vmem:[#allocation8 + $0xc] sm:$0xf]
    %v213 = vld [vmem:[#allocation8 + $0x10] sm:$0xf]
    %v214 = vld [vmem:[#allocation8 + $0x14] sm:$0xf]
    %v215 = vld [vmem:[#allocation8 + $0x18] sm:$0xf]
    %v216 = vld [vmem:[#allocation8 + $0x1c] sm:$0xf]
    %v217 = vld [vmem:[#allocation8 + $0x20] sm:$0xf]
    %v218 = vld [vmem:[#allocation8 + $0x24] sm:$0xf]
    %v219 = vld [vmem:[#allocation8 + $0x28] sm:$0xf]
    %v220 = vld [vmem:[#allocation8 + $0x2c] sm:$0xf]
    %v221 = vld [vmem:[#allocation8 + $0x30] sm:$0xf]
    %v222 = vld [vmem:[#allocation8 + $0x34] sm:$0xf]
    %v223 = vld [vmem:[#allocation8 + $0x38] sm:$0xf]
    %v224 = vld [vmem:[#allocation8 + $0x3c] sm:$0xf]
    %v225 = vld [vmem:[%s4] sm:$0x1]
    %v227 = vperm.slane %v225, 0
    %v231 = vunpack.c.l.b16 %v207
    %v232 = vunpack.c.l.b16 %v208
    %v233 = vpack.c.b16 %v232, %v231
    %v251 = vunpack.c.l.b16 %v209
    %v252 = vunpack.c.l.b16 %v210
    %v253 = vunpack.c.l.b16 %v211
    %v254 = vunpack.c.l.b16 %v212
    %v255 = vunpack.c.l.b16 %v213
    %v256 = vunpack.c.l.b16 %v214
    %v257 = vunpack.c.l.b16 %v215
    %v258 = vunpack.c.l.b16 %v216
    %v259 = vunpack.c.l.b16 %v217
    %v260 = vunpack.c.l.b16 %v218
    %v261 = vunpack.c.l.b16 %v219
    %v262 = vunpack.c.l.b16 %v220
    %v263 = vunpack.c.l.b16 %v221
    %v264 = vunpack.c.l.b16 %v222
    %v265 = vunpack.c.l.b16 %v223
    %v266 = vunpack.c.l.b16 %v224
    %v267 = vpack.c.b16 %v252, %v251
    %v268 = vpack.c.b16 %v254, %v253
    %v269 = vpack.c.b16 %v256, %v255
    %v270 = vpack.c.b16 %v258, %v257
    %v271 = vpack.c.b16 %v260, %v259
    %v272 = vpack.c.b16 %v262, %v261
    %v273 = vpack.c.b16 %v264, %v263
    %v274 = vpack.c.b16 %v266, %v265
    %283 = vmatpush.bf16.msra.mxu0 %v274
    %284 = vmatpush.bf16.msra.mxu0 %v273
    %285 = vmatpush.bf16.msra.mxu0 %v272
    %286 = vmatpush.bf16.msra.mxu0 %v271
    %287 = vmatpush.bf16.msra.mxu0 %v270
    %288 = vmatpush.bf16.msra.mxu0 %v269
    %289 = vmatpush.bf16.msra.mxu0 %v268
    %290 = vmatpush.bf16.msra.mxu0 %v267
    %291 = vmatmul.bf16.gmra.mxu0 %v233
    %v292 = vpop.f32.mrf.mxu0
    %v293 = vadd.f32 %v227, %v292
    %v294 = vpop.f32.mrf.mxu0
    %v295 = vadd.f32 %v227, %v294
    %296 = vdwg.mxu0
    %v297 = vmax.f32 %v293, 0.0
    %v298 = vmax.f32 %v295, 0.0
    %v299 = vpack.c.bf16 %v297, %v297
    %v300 = vpack.c.bf16 %v298, %v298
    %301 = vst [vmem:[#allocation2] sm:$0xf] %v299
    %302 = vst [vmem:[#allocation2 + $0x4] sm:$0xf] %v300
    %v303 = vld [vmem:[#allocation2] sm:$0xf]
    %v304 = vld [vmem:[#allocation2 + $0x4] sm:$0xf]
    %v305 = vld [vmem:[#allocation9] sm:$0xf]
    %v306 = vld [vmem:[#allocation9 + $0x4] sm:$0xf]
    %v307 = vld [vmem:[#allocation9 + $0x8] sm:$0xf]
    %v308 = vld [vmem:[#allocation9 + $0xc] sm:$0xf]
    %v309 = vld [vmem:[#allocation9 + $0x10] sm:$0xf]
    %v310 = vld [vmem:[#allocation9 + $0x14] sm:$0xf]
    %v311 = vld [vmem:[#allocation9 + $0x18] sm:$0xf]
    %v312 = vld [vmem:[#allocation9 + $0x1c] sm:$0xf]
    %v313 = vld [vmem:[#allocation9 + $0x20] sm:$0xf]
    %v314 = vld [vmem:[#allocation9 + $0x24] sm:$0xf]
    %v315 = vld [vmem:[#allocation9 + $0x28] sm:$0xf]
    %v316 = vld [vmem:[#allocation9 + $0x2c] sm:$0xf]
    %v317 = vld [vmem:[#allocation9 + $0x30] sm:$0xf]
    %v318 = vld [vmem:[#allocation9 + $0x34] sm:$0xf]
    %v319 = vld [vmem:[#allocation9 + $0x38] sm:$0xf]
    %v320 = vld [vmem:[#allocation9 + $0x3c] sm:$0xf]
    %v321 = vld [vmem:[%s6] sm:$0x1]
    %v323 = vperm.slane %v321, 0
    %v327 = vunpack.c.l.b16 %v303
    %v328 = vunpack.c.l.b16 %v304
    %v329 = vpack.c.b16 %v328, %v327
    %v347 = vunpack.c.l.b16 %v305
    %v348 = vunpack.c.l.b16 %v306
    %v349 = vunpack.c.l.b16 %v307
    %v350 = vunpack.c.l.b16 %v308
    %v351 = vunpack.c.l.b16 %v309
    %v352 = vunpack.c.l.b16 %v310
    %v353 = vunpack.c.l.b16 %v311
    %v354 = vunpack.c.l.b16 %v312
    %v355 = vunpack.c.l.b16 %v313
    %v356 = vunpack.c.l.b16 %v314
    %v357 = vunpack.c.l.b16 %v315
    %v358 = vunpack.c.l.b16 %v316
    %v359 = vunpack.c.l.b16 %v317
    %v360 = vunpack.c.l.b16 %v318
    %v361 = vunpack.c.l.b16 %v319
    %v362 = vunpack.c.l.b16 %v320
    %v363 = vpack.c.b16 %v348, %v347
    %v364 = vpack.c.b16 %v350, %v349
    %v365 = vpack.c.b16 %v352, %v351
    %v366 = vpack.c.b16 %v354, %v353
    %v367 = vpack.c.b16 %v356, %v355
    %v368 = vpack.c.b16 %v358, %v357
    %v369 = vpack.c.b16 %v360, %v359
    %v370 = vpack.c.b16 %v362, %v361
    %379 = vmatpush.bf16.msra.mxu0 %v370
    %380 = vmatpush.bf16.msra.mxu0 %v369
    %381 = vmatpush.bf16.msra.mxu0 %v368
    %382 = vmatpush.bf16.msra.mxu0 %v367
    %383 = vmatpush.bf16.msra.mxu0 %v366
    %384 = vmatpush.bf16.msra.mxu0 %v365
    %385 = vmatpush.bf16.msra.mxu0 %v364
    %386 = vmatpush.bf16.msra.mxu0 %v363
    %387 = vmatmul.bf16.gmra.mxu0 %v329
    %v388 = vpop.f32.mrf.mxu0
    %v389 = vadd.f32 %v323, %v388
    %v390 = vpop.f32.mrf.mxu0
    %v391 = vadd.f32 %v323, %v390
    %392 = vdwg.mxu0
    %v393 = vmax.f32 %v389, 0.0
    %v394 = vmax.f32 %v391, 0.0
    %v395 = vpack.c.bf16 %v393, %v393
    %v396 = vpack.c.bf16 %v394, %v394
    %397 = vst [vmem:[#allocation2] sm:$0xf] %v395
    %398 = vst [vmem:[#allocation2 + $0x4] sm:$0xf] %v396
    %v399 = vld [vmem:[#allocation2] sm:$0xf]
    %v400 = vld [vmem:[#allocation2 + $0x4] sm:$0xf]
    %v401 = vld [vmem:[#allocation11] sm:$0xf]
    %v402 = vld [vmem:[#allocation11 + $0x4] sm:$0xf]
    %v403 = vld [vmem:[#allocation11 + $0x8] sm:$0xf]
    %v404 = vld [vmem:[#allocation11 + $0xc] sm:$0xf]
    %v405 = vld [vmem:[#allocation11 + $0x10] sm:$0xf]
    %v406 = vld [vmem:[#allocation11 + $0x14] sm:$0xf]
    %v407 = vld [vmem:[#allocation11 + $0x18] sm:$0xf]
    %v408 = vld [vmem:[#allocation11 + $0x1c] sm:$0xf]
    %v409 = vld [vmem:[#allocation11 + $0x20] sm:$0xf]
    %v410 = vld [vmem:[#allocation11 + $0x24] sm:$0xf]
    %v411 = vld [vmem:[#allocation11 + $0x28] sm:$0xf]
    %v412 = vld [vmem:[#allocation11 + $0x2c] sm:$0xf]
    %v413 = vld [vmem:[#allocation11 + $0x30] sm:$0xf]
    %v414 = vld [vmem:[#allocation11 + $0x34] sm:$0xf]
    %v415 = vld [vmem:[#allocation11 + $0x38] sm:$0xf]
    %v416 = vld [vmem:[#allocation11 + $0x3c] sm:$0xf]
    %v417 = vld [vmem:[%s8] sm:$0x1]
    %v419 = vperm.slane %v417, 0
    %v423 = vunpack.c.l.b16 %v399
    %v424 = vunpack.c.l.b16 %v400
    %v425 = vpack.c.b16 %v424, %v423
    %v443 = vunpack.c.l.b16 %v401
    %v444 = vunpack.c.l.b16 %v402
    %v445 = vunpack.c.l.b16 %v403
    %v446 = vunpack.c.l.b16 %v404
    %v447 = vunpack.c.l.b16 %v405
    %v448 = vunpack.c.l.b16 %v406
    %v449 = vunpack.c.l.b16 %v407
    %v450 = vunpack.c.l.b16 %v408
    %v451 = vunpack.c.l.b16 %v409
    %v452 = vunpack.c.l.b16 %v410
    %v453 = vunpack.c.l.b16 %v411
    %v454 = vunpack.c.l.b16 %v412
    %v455 = vunpack.c.l.b16 %v413
    %v456 = vunpack.c.l.b16 %v414
    %v457 = vunpack.c.l.b16 %v415
    %v458 = vunpack.c.l.b16 %v416
    %v459 = vpack.c.b16 %v444, %v443
    %v460 = vpack.c.b16 %v446, %v445
    %v461 = vpack.c.b16 %v448, %v447
    %v462 = vpack.c.b16 %v450, %v449
    %v463 = vpack.c.b16 %v452, %v451
    %v464 = vpack.c.b16 %v454, %v453
    %v465 = vpack.c.b16 %v456, %v455
    %v466 = vpack.c.b16 %v458, %v457
    %475 = vmatpush.bf16.msra.mxu0 %v466
    %476 = vmatpush.bf16.msra.mxu0 %v465
    %477 = vmatpush.bf16.msra.mxu0 %v464
    %478 = vmatpush.bf16.msra.mxu0 %v463
    %479 = vmatpush.bf16.msra.mxu0 %v462
    %480 = vmatpush.bf16.msra.mxu0 %v461
    %481 = vmatpush.bf16.msra.mxu0 %v460
    %482 = vmatpush.bf16.msra.mxu0 %v459
    %483 = vmatmul.bf16.gmra.mxu0 %v425
    %v484 = vpop.f32.mrf.mxu0
    %v485 = vadd.f32 %v419, %v484
    %v486 = vpop.f32.mrf.mxu0
    %v487 = vadd.f32 %v419, %v486
    %488 = vdwg.mxu0
    %489 = vst [vmem:[#allocation12] sm:$0xff] %v485
    %490 = vst [vmem:[#allocation12 + $0x8] sm:$0xff] %v487
    // Predicated region
    $region58: #{tpu_custom_call.1} parent=1 // pred_check
      _
    $region59: #{tpu_custom_call.1} parent=1 // pred_check_branch
      %492 = sbr.rel (0) target = $region61
    $region60: #{tpu_custom_call.1} parent=1 // pred_region
      %494 = vsyncadd [#allocation5], 0
      %s495 = sshll.u32 [#allocation12], 4
      %s496 = int_to_ptr.vmem [resolvable:$true] %s495
      %s497 = sshll.u32 %s9, 4
      %s498 = int_to_ptr.hbm [resolvable:$true] %s497
      %503 = dma.vmem_to_hbm [thread:$0]  %s496, 256, %s498, [#allocation5], 128, 128, 8
    $region61: #{tpu_custom_call.1} parent=1 // pred_fallthru
      _
    // Predicated region
    $region62: #{tpu_custom_call.1} parent=1 // pred_check
      _
    $region63: #{tpu_custom_call.1} parent=1 // pred_check_branch
      %505 = sbr.rel (0) target = $region65
    $region64: #{tpu_custom_call.1} parent=1 // pred_region
      %507 = dma.done [#allocation5], 256
    $region65: #{tpu_custom_call.1} parent=1 // pred_fallthru
      _
    %508 = vsyncpa [#allocation4], 1
    %509 = vsyncpa [#allocation7], 1
    %510 = vsyncpa [#allocation10], 1
    %511 = vsyncpa [#allocation5], 1

</llo_original>
